<compile_context>
chip_gen: v6e
topology: v6e:2x2x1
jax: 0.10.0
libtpu: 0.0.40
codegen_flags: <defaults>
</compile_context>

<pallas_src>
import functools

import jax
import jax.numpy as jnp
from jax.experimental import pallas as pl
from jax.experimental.pallas import tpu as pltpu

_LANE = 128
_NEG = -1e30  # finite "-inf" for padded label lanes; safe ONLY with f32 epilogue


# ----------------------------- kernels --------------------------------------


def _masked_logits(x_ref, w_ref, b_ref, num_labels):
    """Classifier logits for the batch tile; padded label lanes forced to _NEG.

    x_ref: (TB, H) f32 CLS rows (slice fused via BlockSpec, cast fused here)
    w_ref: (H, LPAD) bf16    b_ref: (1, LPAD) f32
    """
    cls = x_ref[...].astype(jnp.bfloat16)               # dropout == identity (eval)
    logits = jnp.dot(cls, w_ref[...],
                     preferred_element_type=jnp.float32) + b_ref[...]
    lane = jax.lax.broadcasted_iota(jnp.int32, logits.shape, 1)
    # Keep the epilogue in f32: exp(_NEG - m) == 0 exactly and _NEG * 0 == 0.
    return jnp.where(lane < num_labels, logits, _NEG), lane


def predict_kernel(x_ref, w_ref, b_ref, out_ref, *, num_labels):
    """Argmax over labels.  Softmax is monotonic, so it is skipped entirely."""
    logits, lane = _masked_logits(x_ref, w_ref, b_ref, num_labels)
    m = jnp.max(logits, axis=1, keepdims=True)
    sentinel = jnp.full_like(lane, logits.shape[1])
    # First index attaining the max (matches torch.argmax tie-breaking).
    # NOTE: rows past B in a partial last tile hold garbage, but rows are
    # independent and Pallas masks the out-of-range output writes -> benign.
    out_ref[...] = jnp.min(jnp.where(logits == m, lane, sentinel),
                           axis=1, keepdims=True)


def loss_kernel(x_ref, w_ref, b_ref, labels_ref, out_ref, *,
                num_labels, batch, tile_b):
    """Per-tile partial sum of cross-entropy (mean taken outside the kernel).

    Per-tile partials + "parallel" grid keep both v7x TensorCores busy instead
    of serializing a single (1,1) accumulator with "arbitrary" semantics.
    """
    i = pl.program_id(0)
    logits, lane = _masked_logits(x_ref, w_ref, b_ref, num_labels)
    m = jnp.max(logits, axis=1, keepdims=True)
    lse = m + jnp.log(jnp.sum(jnp.exp(logits - m), axis=1, keepdims=True))
    # NOTE: out-of-range labels select nothing (picked == 0) rather than error.
    onehot = (lane == labels_ref[...]).astype(jnp.float32)          # (TB, LPAD)
    picked = jnp.sum(logits * onehot, axis=1, keepdims=True)        # (TB, 1)
    per_example = lse - picked                                      # (TB, 1)

    # Zero padded rows of a possibly-partial last batch tile.
    row = jax.lax.broadcasted_iota(jnp.int32, per_example.shape, 0) + i * tile_b
    per_example = jnp.where(row < batch, per_example, 0.0)

    out_ref[...] = jnp.sum(per_example, axis=0, keepdims=True)      # (1,1) partial


# ----------------------------- wrappers --------------------------------------


def prepare_classifier_params(params):
    """Pad fc weight/bias to a lane-dense 128-wide slab ONCE (hoisted out of
    the per-call forward, per the performance review)."""
    w = jnp.asarray(params["fc_w"], jnp.float32)          # (H, L) pre-transposed
    b = jnp.asarray(params["fc_b"], jnp.float32).reshape(1, -1)
    H, L = w.shape
    lpad = pl.cdiv(L, _LANE) * _LANE
    w_pad = jnp.zeros((H, lpad), jnp.bfloat16).at[:, :L].set(w.astype(jnp.bfloat16))
    b_pad = jnp.zeros((1, lpad), jnp.float32).at[:, :L].set(b)
    return w_pad, b_pad


def _pick_tile_b(batch, hidden, lpad, tile_b):
    """Whole batch when it fits; otherwise a large multiple of 256 capped so the
    double-buffered f32 input tile + bf16 weight slab stay under ~16 MiB
    (comfortable on v7x's 32 MiB scoped-VMEM default / 64 MiB physical)."""
    if batch <= tile_b:
        return batch
    budget = 16 * 1024 * 1024
    tb = max(256, (tile_b // 256) * 256)
    while tb > 256 and 2 * tb * hidden * 4 + 2 * hidden * lpad * 2 > budget:
        tb //= 2
    return tb


@functools.partial(jax.jit, static_argnames=("num_labels", "tile_b"))
def bert_classifier_forward(w_pad, b_pad, last_hidden_state, labels=None, *,
                            num_labels, tile_b=512):
    """Mirrors BertClassifier.forward starting from bert's last_hidden_state."""
    B, S, H = last_hidden_state.shape
    lpad = w_pad.shape[1]
    L = num_labels

    tb = _pick_tile_b(B, H, lpad, tile_b)
    grid = (pl.cdiv(B, tb),)
    num_tiles = grid[0]

    # Fuse the CLS slice + cast into the pallas_call: a free reshape puts CLS
    # row b at x2d[b, 0:H], so the BlockSpec below DMAs exactly those rows
    # straight from HBM (strided read, B*H*4 bytes), and the bf16 cast happens
    # inside the kernel.  Falls back to a wrapper slice if H is not a multiple
    # of 128 (never the case for real BERT hidden sizes).
    if H % _LANE == 0:
        x_in = last_hidden_state.reshape(B, S * H)
    else:
        # TODO(synk): non-lane-aligned H pays one extra HBM round trip here.
        x_in = last_hidden_state[:, 0, :]
    cls_spec = pl.BlockSpec((tb, H), lambda i: (i, 0))
    w_spec = pl.BlockSpec((H, lpad), lambda i: (0, 0))
    b_spec = pl.BlockSpec((1, lpad), lambda i: (0, 0))

    flops = 2 * B * H * lpad
    bytes_in = B * H * 4 + H * lpad * 2 + lpad * 4

    if labels is not None:
        labels_col = labels.astype(jnp.int32).reshape(B, 1)
        partials = pl.pallas_call(
            functools.partial(loss_kernel, num_labels=L, batch=B, tile_b=tb),
            out_shape=jax.ShapeDtypeStruct((num_tiles, 1), jnp.float32),
            grid=grid,
            in_specs=[cls_spec, w_spec, b_spec,
                      pl.BlockSpec((tb, 1), lambda i: (i, 0))],
            out_specs=pl.BlockSpec((1, 1), lambda i: (i, 0)),
            compiler_params=pltpu.CompilerParams(
                dimension_semantics=("parallel",)),      # per-tile partials
            cost_estimate=pl.CostEstimate(
                flops=flops, transcendentals=B * lpad,
                bytes_accessed=bytes_in + B * 4 + num_tiles * 4),
        )(x_in, w_pad, b_pad, labels_col)
        return jnp.sum(partials) / B                     # mean cross-entropy

    pred = pl.pallas_call(
        functools.partial(predict_kernel, num_labels=L),
        out_shape=jax.ShapeDtypeStruct((B, 1), jnp.int32),
        grid=grid,
        in_specs=[cls_spec, w_spec, b_spec],
        out_specs=pl.BlockSpec((tb, 1), lambda i: (i, 0)),
        compiler_params=pltpu.CompilerParams(
            dimension_semantics=("parallel",)),          # megacore split on v7x
        cost_estimate=pl.CostEstimate(
            flops=flops, transcendentals=0, bytes_accessed=bytes_in + B * 4),
    )(x_in, w_pad, b_pad)
    return pred.reshape(B)


def reference_forward(params, last_hidden_state, labels=None):
    """Pure-JAX reference with the same bf16-operand / f32-accumulate numerics."""
    w = jnp.asarray(params["fc_w"], jnp.float32)
    b = jnp.asarray(params["fc_b"], jnp.float32).reshape(1, -1)
    cls = last_hidden_state[:, 0, :].astype(jnp.bfloat16)
    logits = jnp.dot(cls, w.astype(jnp.bfloat16),
                     preferred_element_type=jnp.float32) + b
    if labels is not None:
        lse = jax.scipy.special.logsumexp(logits, axis=1)
        picked = jnp.take_along_axis(logits, labels[:, None], axis=1)[:, 0]
        return jnp.mean(lse - picked)
    # argmax(softmax(x)) == argmax(x); first-index tie-break like torch.argmax.
    return jnp.argmax(logits, axis=1).astype(jnp.int32)


# ------------------------------- main ----------------------------------------

if __name__ == "__main__":
    # batch, seq, hidden_size (BERT-tiny width, lane-aligned), label_number
    B, S, H, L = 2, 8, 128, 4

    key = jax.random.PRNGKey(0)
    k_hidden, k_w, k_b, k_lab = jax.random.split(key, 4)

    # Simulated bert last_hidden_state (bert is an external injected module).
    last_hidden_state = jax.random.normal(k_hidden, (B, S, H), dtype=jnp.float32)

    # nn.Linear(hidden_size, label_number): weight stored pre-transposed (H, L).
    params = {
        "fc_w": jax.random.normal(k_w, (H, L), dtype=jnp.float32) * 0.05,
        "fc_b": jax.random.normal(k_b, (1, L), dtype=jnp.float32) * 0.05,
    }
    labels = jax.random.randint(k_lab, (B,), 0, L, dtype=jnp.int32)

    # Pad classifier weights once (hoisted out of the forward).
    w_pad, b_pad = prepare_classifier_params(params)

    # Training path: mean cross-entropy loss.
    loss = jax.block_until_ready(
        bert_classifier_forward(w_pad, b_pad, last_hidden_state, labels,
                                num_labels=L))
    loss_ref = reference_forward(params, last_hidden_state, labels)
    assert jnp.allclose(loss, loss_ref, atol=1e-4, rtol=1e-4), (loss, loss_ref)

    # Inference path: argmax of (implicit) softmax.
    pred = jax.block_until_ready(
        bert_classifier_forward(w_pad, b_pad, last_hidden_state, num_labels=L))
    pred_ref = reference_forward(params, last_hidden_state)
    assert jnp.array_equal(pred, pred_ref), (pred, pred_ref)

    print("KERNEL_OK")
</pallas_src>

<mosaic_0001>
module attributes {stable_mosaic.version = 11 : i64} {
  func.func @loss_kernel(%arg0: i32, %arg1: memref<2x128xf32, #tpu.memory_space<vmem>>, %arg2: memref<128x128xbf16, #tpu.memory_space<vmem>>, %arg3: memref<1x128xf32, #tpu.memory_space<vmem>>, %arg4: memref<2x1xi32, #tpu.memory_space<vmem>>, %arg5: memref<1x1xf32, #tpu.memory_space<vmem>>) attributes {dimension_semantics = [#tpu.dimension_semantics<parallel>], iteration_bounds = array<i64: 1>, scalar_prefetch = 0 : i64, scratch_operands = 0 : i64, tpu.core_type = #tpu.core_type<tc>, window_params = [{transform_indices = @transform_0, window_bounds = array<i64: 2, 128>}, {pipeline_mode = #tpu.pipeline_mode<synchronous>, transform_indices = @transform_1, window_bounds = array<i64: 128, 128>}, {pipeline_mode = #tpu.pipeline_mode<synchronous>, transform_indices = @transform_2, window_bounds = array<i64: 1, 128>}, {transform_indices = @transform_3, window_bounds = array<i64: 2, 1>}, {transform_indices = @transform_4, window_bounds = array<i64: 1, 1>}]} {
    %c0 = arith.constant 0 : index
    %c0_0 = arith.constant 0 : index
    %0 = vector.load %arg1[%c0, %c0_0] : memref<2x128xf32, #tpu.memory_space<vmem>>, vector<2x128xf32>
    %1 = arith.truncf %0 : vector<2x128xf32> to vector<2x128xbf16>
    %c0_1 = arith.constant 0 : index
    %c0_2 = arith.constant 0 : index
    %2 = vector.load %arg2[%c0_1, %c0_2] : memref<128x128xbf16, #tpu.memory_space<vmem>>, vector<128x128xbf16>
    %cst = arith.constant dense<0.000000e+00> : vector<2x128xf32>
    %3 = tpu.matmul %1, %2, %cst {dimension_numbers = #tpu.dot_dimension_numbers<[1], [0], [0], [1], [0, 0, 1, 1], [], []>} : vector<2x128xbf16>, vector<128x128xbf16>, vector<2x128xf32> -> vector<2x128xf32>
    %c0_3 = arith.constant 0 : index
    %c0_4 = arith.constant 0 : index
    %4 = vector.load %arg3[%c0_3, %c0_4] : memref<1x128xf32, #tpu.memory_space<vmem>>, vector<1x128xf32>
    %5 = vector.broadcast %4 : vector<1x128xf32> to vector<2x128xf32>
    %6 = arith.addf %3, %5 : vector<2x128xf32>
    %7 = tpu.iota {dimensions = array<i32: 1>} : vector<2x128xi32>
    %c4_i32 = arith.constant 4 : i32
    %8 = vector.broadcast %c4_i32 : i32 to vector<2x128xi32>
    %9 = arith.cmpi slt, %7, %8 : vector<2x128xi32>
    %cst_5 = arith.constant -1.000000e+30 : f32
    %10 = vector.broadcast %cst_5 : f32 to vector<2x128xf32>
    %11 = arith.select %9, %6, %10 : vector<2x128xi1>, vector<2x128xf32>
    %cst_6 = arith.constant dense<0xFF800000> : vector<2xf32>
    %12 = vector.multi_reduction <maximumf>, %11, %cst_6 [1] : vector<2x128xf32> to vector<2xf32>
    %13 = vector.shape_cast %12 : vector<2xf32> to vector<2x1xf32>
    %14 = vector.broadcast %13 : vector<2x1xf32> to vector<2x128xf32>
    %15 = arith.subf %11, %14 : vector<2x128xf32>
    %16 = math.exp %15 : vector<2x128xf32>
    %cst_7 = arith.constant dense<0.000000e+00> : vector<2xf32>
    %17 = vector.multi_reduction <add>, %16, %cst_7 [1] : vector<2x128xf32> to vector<2xf32>
    %18 = vector.shape_cast %17 : vector<2xf32> to vector<2x1xf32>
    %19 = math.log %18 : vector<2x1xf32>
    %20 = arith.addf %13, %19 : vector<2x1xf32>
    %c0_8 = arith.constant 0 : index
    %c0_9 = arith.constant 0 : index
    %21 = vector.load %arg4[%c0_8, %c0_9] : memref<2x1xi32, #tpu.memory_space<vmem>>, vector<2x1xi32>
    %22 = vector.broadcast %21 : vector<2x1xi32> to vector<2x128xi32>
    %23 = arith.cmpi eq, %7, %22 : vector<2x128xi32>
    %24 = arith.extui %23 : vector<2x128xi1> to vector<2x128xi32>
    %25 = arith.sitofp %24 : vector<2x128xi32> to vector<2x128xf32>
    %26 = arith.mulf %11, %25 : vector<2x128xf32>
    %cst_10 = arith.constant dense<0.000000e+00> : vector<2xf32>
    %27 = vector.multi_reduction <add>, %26, %cst_10 [1] : vector<2x128xf32> to vector<2xf32>
    %28 = vector.shape_cast %27 : vector<2xf32> to vector<2x1xf32>
    %29 = arith.subf %20, %28 : vector<2x1xf32>
    %30 = tpu.iota {dimensions = array<i32: 0>} : vector<2x1xi32>
    %c2_i32 = arith.constant 2 : i32
    %31 = arith.muli %arg0, %c2_i32 : i32
    %32 = vector.broadcast %31 : i32 to vector<2x1xi32>
    %33 = arith.addi %30, %32 : vector<2x1xi32>
    %c2_i32_11 = arith.constant 2 : i32
    %34 = vector.broadcast %c2_i32_11 : i32 to vector<2x1xi32>
    %35 = arith.cmpi slt, %33, %34 : vector<2x1xi32>
    %cst_12 = arith.constant 0.000000e+00 : f32
    %36 = vector.broadcast %cst_12 : f32 to vector<2x1xf32>
    %37 = arith.select %35, %29, %36 : vector<2x1xi1>, vector<2x1xf32>
    %cst_13 = arith.constant dense<0.000000e+00> : vector<1xf32>
    %38 = vector.multi_reduction <add>, %37, %cst_13 [0] : vector<2x1xf32> to vector<1xf32>
    %39 = vector.shape_cast %38 : vector<1xf32> to vector<1x1xf32>
    %c0_14 = arith.constant 0 : index
    %c0_15 = arith.constant 0 : index
    %40 = vector.load %arg5[%c0_14, %c0_15] : memref<1x1xf32, #tpu.memory_space<vmem>>, vector<1x1xf32>
    tpu.vector_store %arg5[%c0_14, %c0_15], %39 {strides = array<i32>} : memref<1x1xf32, #tpu.memory_space<vmem>>, vector<1x1xf32>,
    return
  }
  func.func @transform_0(%arg0: i32) -> (i32, i32) {
    %c0_i32 = arith.constant 0 : i32
    %c0_i32_0 = arith.constant 0 : i32
    return %arg0, %c0_i32 : i32, i32
  }
  func.func @transform_1(%arg0: i32) -> (i32, i32) {
    %c0_i32 = arith.constant 0 : i32
    %c0_i32_0 = arith.constant 0 : i32
    %c0_i32_1 = arith.constant 0 : i32
    return %c0_i32, %c0_i32_0 : i32, i32
  }
  func.func @transform_2(%arg0: i32) -> (i32, i32) {
    %c0_i32 = arith.constant 0 : i32
    %c0_i32_0 = arith.constant 0 : i32
    %c0_i32_1 = arith.constant 0 : i32
    return %c0_i32, %c0_i32_0 : i32, i32
  }
  func.func @transform_3(%arg0: i32) -> (i32, i32) {
    %c0_i32 = arith.constant 0 : i32
    %c0_i32_0 = arith.constant 0 : i32
    return %arg0, %c0_i32 : i32, i32
  }
  func.func @transform_4(%arg0: i32) -> (i32, i32) {
    %c0_i32 = arith.constant 0 : i32
    %c0_i32_0 = arith.constant 0 : i32
    return %arg0, %c0_i32 : i32, i32
  }
}

</mosaic_0001>

<llo_original>
// kernel: bert_classifier_forward.1
$region0: #{bert_classifier_forward.1}
  #allocation0 [shape = 'u32[]', space=smem, size = 0x4, offset = 0x4, fixed_abs, tag = 'smem constant byte address 0x4 - core index']
  #allocation1 [shape = 'u32[144,128]{1,0:T(1,128)}', space=vmem, size = 0x12000, scoped, tag = 'internal scratch']
  %s0 = inlined_call_operand.vmem [shape: f32[2,1024], index: 0, kind: input, shape index: {}]
  %s1 = inlined_call_operand.hbm [shape: bf16[128,128], index: 1, kind: input, shape index: {}]
  %s2 = inlined_call_operand.vmem [shape: f32[1,128], index: 2, kind: input, shape index: {}]
  %s3 = inlined_call_operand.vmem [shape: s32[2,1], index: 3, kind: input, shape index: {}]
  %s4 = inlined_call_operand.hbm [shape: f32[1,1], index: 4, kind: output, shape index: {}]
  %s5 = sld [smem:[#allocation0]]
  $region30: #{bert_classifier_forward.1} parent=0
    _
  %s7 = ssub.s32 1, %s5
  %s8 = scalar_select 0, %s7, %s5
  $region1: #{bert_classifier_forward.1} parent=0
    #allocation2 [shape = 'u8[32768]{0}', space=vmem, size = 0x8000, scoped, tag = 'input window, operand 1, single buffered']
    #allocation3 [shape = 's32[1]{0}', space=sflag, size = 0x4, scoped, tag = 'scoped memory for bert_classifier_forward.1']
    #allocation4 [shape = 's32[1]{0}', space=sflag, size = 0x4, scoped, tag = 'scoped memory for bert_classifier_forward.1']
    #allocation5 [shape = 'u8[512]{0}', space=vmem, size = 0x400, scoped, tag = 'output window, operand 0, single buffered']
    %9 = vsyncpa [#allocation3], 0
    %10 = vsyncpa [#allocation4], 0
    // Predicated region
    $region2: #{bert_classifier_forward.1} parent=1 // pred_check
      _
    $region3: #{bert_classifier_forward.1} parent=1 // pred_check_branch
      %12 = sbr.rel (0) target = $region5
    $region4: #{bert_classifier_forward.1} parent=1 // pred_region
      _
    $region5: #{bert_classifier_forward.1} parent=1 // pred_fallthru
      _
    // Predicated region
    $region6: #{bert_classifier_forward.1} parent=1 // pred_check
      _
    $region7: #{bert_classifier_forward.1} parent=1 // pred_check_branch
      %14 = sbr.rel (0) target = $region9
    $region8: #{bert_classifier_forward.1} parent=1 // pred_region
      %s16 = ssub.s32 1024, 1024
      %17 = vsyncadd [#allocation3], %s16
      %s18 = sshll.u32 [#allocation2], 4
      %s19 = int_to_ptr.vmem [resolvable:$true] %s18
      %24 = dma.hbm_to_vmem [thread:$0]  %s1, 1024, %s19, [#allocation3], 64, 64, 4
    $region9: #{bert_classifier_forward.1} parent=1 // pred_fallthru
      _
    // Predicated region
    $region10: #{bert_classifier_forward.1} parent=1 // pred_check
      _
    $region11: #{bert_classifier_forward.1} parent=1 // pred_check_branch
      %26 = sbr.rel (0) target = $region13
    $region12: #{bert_classifier_forward.1} parent=1 // pred_region
      _
    $region13: #{bert_classifier_forward.1} parent=1 // pred_fallthru
      _
    // Predicated region
    $region14: #{bert_classifier_forward.1} parent=1 // pred_check
      _
    $region15: #{bert_classifier_forward.1} parent=1 // pred_check_branch
      %28 = sbr.rel (0) target = $region17
    $region16: #{bert_classifier_forward.1} parent=1 // pred_region
      _
    $region17: #{bert_classifier_forward.1} parent=1 // pred_fallthru
      _
    // Predicated region
    $region18: #{bert_classifier_forward.1} parent=1 // pred_check
      _
    $region19: #{bert_classifier_forward.1} parent=1 // pred_check_branch
      %30 = sbr.rel (0) target = $region21
    $region20: #{bert_classifier_forward.1} parent=1 // pred_region
      %31 = dma.done [#allocation3], 1024
    $region21: #{bert_classifier_forward.1} parent=1 // pred_fallthru
      _
    %v33 = vld [vmem:[%s0] sm:$0x3]
    %v34 = vpack.c.bf16 %v33, %v33
    %v35 = vld [vmem:[#allocation2] sm:$0xf]
    %v36 = vld [vmem:[#allocation2 + $0x4] sm:$0xf]
    %v37 = vld [vmem:[#allocation2 + $0x8] sm:$0xf]
    %v38 = vld [vmem:[#allocation2 + $0xc] sm:$0xf]
    %v39 = vld [vmem:[#allocation2 + $0x10] sm:$0xf]
    %v40 = vld [vmem:[#allocation2 + $0x14] sm:$0xf]
    %v41 = vld [vmem:[#allocation2 + $0x18] sm:$0xf]
    %v42 = vld [vmem:[#allocation2 + $0x1c] sm:$0xf]
    %v43 = vld [vmem:[#allocation2 + $0x20] sm:$0xf]
    %v44 = vld [vmem:[#allocation2 + $0x24] sm:$0xf]
    %v45 = vld [vmem:[#allocation2 + $0x28] sm:$0xf]
    %v46 = vld [vmem:[#allocation2 + $0x2c] sm:$0xf]
    %v47 = vld [vmem:[#allocation2 + $0x30] sm:$0xf]
    %v48 = vld [vmem:[#allocation2 + $0x34] sm:$0xf]
    %v49 = vld [vmem:[#allocation2 + $0x38] sm:$0xf]
    %v50 = vld [vmem:[#allocation2 + $0x3c] sm:$0xf]
    %v51 = vld [vmem:[%s2] sm:$0x1]
    %v53 = vlaneseq
    %v54 = vshrl.u32 %v53, 7
    %v55 = vsub.s32 0, %v54
    %v56 = vrot.slane %v51, %v55
    %v74 = vunpack.c.l.b16 %v35
    %v75 = vunpack.c.l.b16 %v36
    %v76 = vunpack.c.l.b16 %v37
    %v77 = vunpack.c.l.b16 %v38
    %v78 = vunpack.c.l.b16 %v39
    %v79 = vunpack.c.l.b16 %v40
    %v80 = vunpack.c.l.b16 %v41
    %v81 = vunpack.c.l.b16 %v42
    %v82 = vunpack.c.l.b16 %v43
    %v83 = vunpack.c.l.b16 %v44
    %v84 = vunpack.c.l.b16 %v45
    %v85 = vunpack.c.l.b16 %v46
    %v86 = vunpack.c.l.b16 %v47
    %v87 = vunpack.c.l.b16 %v48
    %v88 = vunpack.c.l.b16 %v49
    %v89 = vunpack.c.l.b16 %v50
    %v90 = vpack.c.b16 %v75, %v74
    %v91 = vpack.c.b16 %v77, %v76
    %v92 = vpack.c.b16 %v79, %v78
    %v93 = vpack.c.b16 %v81, %v80
    %v94 = vpack.c.b16 %v83, %v82
    %v95 = vpack.c.b16 %v85, %v84
    %v96 = vpack.c.b16 %v87, %v86
    %v97 = vpack.c.b16 %v89, %v88
    %106 = vmatprep.subr.bf16.mxu0 0
    %107 = vmatpush1.bf16.msra.mxu0 %v97
    %108 = vmatprep.subr.bf16.mxu0 0
    %109 = vmatpush1.bf16.msra.mxu0 %v96
    %110 = vmatprep.subr.bf16.mxu0 0
    %111 = vmatpush1.bf16.msra.mxu0 %v95
    %112 = vmatprep.subr.bf16.mxu0 0
    %113 = vmatpush1.bf16.msra.mxu0 %v94
    %114 = vmatprep.subr.bf16.mxu0 0
    %115 = vmatpush1.bf16.msra.mxu0 %v93
    %116 = vmatprep.subr.bf16.mxu0 0
    %117 = vmatpush1.bf16.msra.mxu0 %v92
    %118 = vmatprep.subr.bf16.mxu0 0
    %119 = vmatpush1.bf16.msra.mxu0 %v91
    %120 = vmatprep.subr.bf16.mxu0 0
    %121 = vmatpush1.bf16.msra.mxu0 %v90
    %122 = vmatprep.subr.bf16.mxu0 0
    %123 = vmatpush2.bf16.msra.mxu0 0
    %124 = vmatprep.subr.bf16.mxu0 0
    %125 = vmatpush2.bf16.msra.mxu0 0
    %126 = vmatprep.subr.bf16.mxu0 0
    %127 = vmatpush2.bf16.msra.mxu0 0
    %128 = vmatprep.subr.bf16.mxu0 0
    %129 = vmatpush2.bf16.msra.mxu0 0
    %130 = vmatprep.subr.bf16.mxu0 0
    %131 = vmatpush2.bf16.msra.mxu0 0
    %132 = vmatprep.subr.bf16.mxu0 0
    %133 = vmatpush2.bf16.msra.mxu0 0
    %134 = vmatprep.subr.bf16.mxu0 0
    %135 = vmatpush2.bf16.msra.mxu0 0
    %136 = vmatprep.subr.bf16.mxu0 0
    %137 = vmatpush2.bf16.msra.mxu0 0
    %138 = vmatprep.mubr.bf16.mxu0 0
    %139 = vmatmul.mubr.bf16.gmra.mxu0 %v34
    %v140 = vpop.f32.mrf.mxu0
    %v141 = vadd.f32 %v56, %v140
    %v142 = vpop.f32.mrf.mxu0
    %v143 = vpop.f32.mrf.mxu0
    %v144 = vpop.f32.mrf.mxu0
    %145 = vdwg.mxu0
    %v146 = vlaneseq
    %v147 = vand.u32 %v146, 127
    %vm148 = vcmp.lt.s32.totalorder %v147, 4
    %v149 = vsel %vm148, %v141, -1e+30
    %vm150 = vcmask 1041408
    %v151 = vsel %vm150, %v149, -inf
    %152 = vmax.xlane.f32.xlu0 %v151
    %v153 = vpop.xlane.xlu0 %152
    %v154 = vsub.f32 %v149, %v153
    %v155 = vmul.f32 %v154, 1.442695
    %v156 = vpow.pop %v155
    %v157 = vsel %vm150, %v156, 0.0
    %158 = vadd.xlane.f32.xlu0 %v157
    %v159 = vpop.xlane.xlu0 %158
    %v160 = vlog2.pop %v159
    %v161 = vmul.f32 %v160, 0.6931472
    %v162 = vadd.f32 %v153, %v161
    %v163 = vld [vmem:[%s3] sm:$0x3]
    %164 = vset.pattern.permute.xlu0 0
    %165 = vperm.xlu0 %164, %v163
    %v166 = vpop.permute.xlu0 %165
    %vm167 = vcmp.eq.s32.totalorder %v147, %v166
    %v168 = vsel %vm167, 1, 0
    %v169 = vcvt.s32.f32 %v168
    %v170 = vmul.f32 %v149, %v169
    %v171 = vsel %vm150, %v170, 0.0
    %172 = vadd.xlane.f32.xlu0 %v171
    %v173 = vpop.xlane.xlu0 %172
    %v174 = vsub.f32 %v162, %v173
    %v175 = vlaneseq
    %v176 = vshrl.u32 %v175, 7
    %s177 = smul.u32 0, 2
    %v178 = vstv %s177
    %v179 = vadd.s32 %v176, %v178
    %vm180 = vcmp.lt.s32.totalorder %v179, 2
    %v181 = vsel %vm180, %v174, 0.0
    %v182 = vsel %vm150, %v181, 0.0
    %v183 = vrot.slane %v182, 4
    %v184 = vadd.f32 %v182, %v183
    %v185 = vrot.slane %v184, 2
    %v186 = vadd.f32 %v184, %v185
    %v187 = vrot.slane %v186, 1
    %v188 = vadd.f32 %v186, %v187
    %vm189 = vcmask 0
    %190 = vst.msk [vmem:[#allocation5] sm:$0x1] %vm189, %v188
    // Predicated region
    $region22: #{bert_classifier_forward.1} parent=1 // pred_check
      _
    $region23: #{bert_classifier_forward.1} parent=1 // pred_check_branch
      %192 = sbr.rel (0) target = $region25
    $region24: #{bert_classifier_forward.1} parent=1 // pred_region
      %s194 = ssub.s32 16, 16
      %195 = vsyncadd [#allocation4], %s194
      %s197 = sshll.u32 [#allocation5], 4
      %s198 = int_to_ptr.vmem [resolvable:$true] %s197
      %200 = dma.vmem_to_hbm [thread:$0]  %s198, 16, %s4, [#allocation4]
    $region25: #{bert_classifier_forward.1} parent=1 // pred_fallthru
      _
    // Predicated region
    $region26: #{bert_classifier_forward.1} parent=1 // pred_check
      _
    $region27: #{bert_classifier_forward.1} parent=1 // pred_check_branch
      %202 = sbr.rel (0) target = $region29
    $region28: #{bert_classifier_forward.1} parent=1 // pred_region
      %203 = dma.done [#allocation4], 16
    $region29: #{bert_classifier_forward.1} parent=1 // pred_fallthru
      _
    %204 = vsyncpa [#allocation3], 1
    %205 = vsyncpa [#allocation4], 1

</llo_original>
